<compile_context>
chip_gen: v5e
topology: v5e:2x2
jax: 0.10.0
libtpu: 0.0.40
codegen_flags: <defaults>
</compile_context>

<pallas_src>
import functools

import jax
import jax.numpy as jnp
from jax.experimental import pallas as pl
from jax.experimental.pallas import tpu as pltpu


def _round_up(x, m):
    return ((x + m - 1) // m) * m


def _supcon_kernel(rlab_ref, clab_ref, a_ref, c_ref, out_ref,
                   m_sc, d_sc, s_sc, p_sc,
                   *, inv_temp, loss_scale, n_contrast, tile_r, tile_c):
    i = pl.program_id(0)          # anchor-row block   ("parallel")
    k = pl.program_id(1)          # contrast-col block ("arbitrary" / reduction)

    @pl.when(k == 0)
    def _():
        m_sc[...] = jnp.full_like(m_sc, -jnp.inf)
        d_sc[...] = jnp.zeros_like(d_sc)
        s_sc[...] = jnp.zeros_like(s_sc)
        p_sc[...] = jnp.zeros_like(p_sc)

    # Fold 1/temperature into the small (TR, D) anchor tile.
    a = a_ref[...] * inv_temp
    c = c_ref[...]
    # scores (TR, TC): contract the feature axis of BOTH operands (A @ C^T
    # without materializing a transpose of the contrast tile).
    s = jax.lax.dot_general(a, c, (((1,), (1,)), ((), ())),
                            preferred_element_type=jnp.float32)

    # Rebuild masks in-kernel (no N x N HBM traffic).
    row_ids = jax.lax.broadcasted_iota(jnp.int32, s.shape, 0) + i * tile_r
    col_ids = jax.lax.broadcasted_iota(jnp.int32, s.shape, 1) + k * tile_c
    col_valid = col_ids < n_contrast                         # drop padded cols
    not_self = (row_ids != col_ids) & col_valid              # logits_mask
    pos_mask = (rlab_ref[...] == clab_ref[...]) & not_self   # positive pairs

    # --- online softmax denominator across contrast blocks ---
    s_valid = jnp.where(col_valid, s, -jnp.inf)
    m_new = jnp.maximum(m_sc[...], jnp.max(s_valid, axis=1, keepdims=True))
    rescale = jnp.exp(m_sc[...] - m_new)
    d_sc[...] = d_sc[...] * rescale + jnp.sum(
        jnp.where(not_self, jnp.exp(s - m_new), 0.0), axis=1, keepdims=True)
    m_sc[...] = m_new

    # --- shift-free accumulators: sum(mask * s) and positive-pair count ---
    s_sc[...] = s_sc[...] + jnp.sum(jnp.where(pos_mask, s, 0.0),
                                    axis=1, keepdims=True)
    p_sc[...] = p_sc[...] + jnp.sum(pos_mask.astype(jnp.float32),
                                    axis=1, keepdims=True)

    @pl.when(k == pl.num_programs(1) - 1)
    def _():
        pos = p_sc[...]
        # emulate mask.sum(1).long() then where(< 1e-6, 1, .)
        pos = jnp.where(pos < 1e-6, 1.0, jnp.floor(pos))
        log_denom = m_sc[...] + jnp.log(d_sc[...])
        # sum(mask*log_prob) == sum(mask*s) - pos * log(sum(exp(s)*logits_mask))
        mean_log_prob_pos = (s_sc[...] - pos * log_denom) / pos
        out_ref[...] = (loss_scale * mean_log_prob_pos).astype(out_ref.dtype)


def supcon_loss(features, labels=None, mask=None, temperature=0.07,
                contrast_mode='all', base_temperature=0.07):
    """JAX/Pallas port of SupConLoss.forward.

    features: [bsz, n_views, ...] float
    labels:   [bsz] int, optional
    mask:     [bsz, bsz] float, optional
    """
    if features.ndim < 3:
        raise ValueError('`features` needs to be [bsz, n_views, ...]')
    if features.ndim > 3:
        features = features.reshape(features.shape[0], features.shape[1], -1)
    bsz, n_views, dim = features.shape

    if labels is not None and mask is not None:
        raise ValueError('Cannot define both `labels` and `mask`')
    if mask is not None:
        # Rare path: arbitrary (possibly asymmetric / non-binary) bsz x bsz mask.
        # TODO(synk): Pallas variant taking tiled big-mask blocks for explicit `mask`.
        return _reference_supcon(features, mask=mask, temperature=temperature,
                                 contrast_mode=contrast_mode,
                                 base_temperature=base_temperature)

    if labels is None:
        # mask = eye(bsz)  <=>  every sample has a unique label.
        labels = jnp.arange(bsz, dtype=jnp.int32)
    else:
        labels = jnp.asarray(labels).reshape(-1).astype(jnp.int32)
        if labels.shape[0] != bsz:
            raise ValueError('Num of labels does not match num of features')

    features = features.astype(jnp.float32)
    contrast_count = n_views
    # torch.cat(torch.unbind(features, dim=1), dim=0): view-major ordering.
    contrast_feature = jnp.transpose(features, (1, 0, 2)).reshape(
        n_views * bsz, dim)

    if contrast_mode == 'one':
        anchor_feature = features[:, 0, :]
        anchor_count = 1
    elif contrast_mode == 'all':
        anchor_feature = contrast_feature
        anchor_count = contrast_count
    else:
        raise ValueError('Unknown mode: {}'.format(contrast_mode))

    n_anchor = anchor_count * bsz
    n_contrast = contrast_count * bsz
    row_labels = jnp.tile(labels, anchor_count)     # (n_anchor,)
    col_labels = jnp.tile(labels, contrast_count)   # (n_contrast,)

    # Lane/sublane aligned tiles; O(tile^2) VMEM, double-buffered feature DMAs.
    tile_r = min(256, _round_up(n_anchor, 8))
    tile_c = min(512, _round_up(n_contrast, 128))
    dim_p = _round_up(dim, 128)
    rows_p = _round_up(n_anchor, tile_r)
    cols_p = _round_up(n_contrast, tile_c)

    anchor_p = jnp.zeros((rows_p, dim_p), jnp.float32)
    anchor_p = anchor_p.at[:n_anchor, :dim].set(anchor_feature)
    contrast_p = jnp.zeros((cols_p, dim_p), jnp.float32)
    contrast_p = contrast_p.at[:n_contrast, :dim].set(contrast_feature)
    rlab_p = jnp.full((rows_p, 1), -1, jnp.int32).at[:n_anchor, 0].set(row_labels)
    clab_p = jnp.full((1, cols_p), -1, jnp.int32).at[0, :n_contrast].set(col_labels)

    kernel = functools.partial(
        _supcon_kernel,
        inv_temp=1.0 / float(temperature),
        loss_scale=-(float(temperature) / float(base_temperature)),
        n_contrast=n_contrast, tile_r=tile_r, tile_c=tile_c)

    per_row = pl.pallas_call(
        kernel,
        out_shape=jax.ShapeDtypeStruct((rows_p, 1), jnp.float32),
        grid_spec=pltpu.PrefetchScalarGridSpec(
            num_scalar_prefetch=0,
            grid=(rows_p // tile_r, cols_p // tile_c),
            in_specs=[
                pl.BlockSpec((tile_r, 1), lambda i, k: (i, 0)),      # row labels
                pl.BlockSpec((1, tile_c), lambda i, k: (0, k)),      # col labels
                pl.BlockSpec((tile_r, dim_p), lambda i, k: (i, 0)),  # anchor tile
                pl.BlockSpec((tile_c, dim_p), lambda i, k: (k, 0)),  # contrast tile
            ],
            out_specs=pl.BlockSpec((tile_r, 1), lambda i, k: (i, 0)),
            scratch_shapes=[pltpu.VMEM((tile_r, 1), jnp.float32)] * 4,
        ),
        compiler_params=pltpu.CompilerParams(
            dimension_semantics=("parallel", "arbitrary")),
    )(rlab_p, clab_p, anchor_p, contrast_p)

    # loss.view(anchor_count, batch_size).mean() == mean over all anchor rows.
    return jnp.mean(per_row[:n_anchor, 0])


def _reference_supcon(features, labels=None, mask=None, temperature=0.07,
                      contrast_mode='all', base_temperature=0.07):
    """Pure-JAX reference mirroring the torch code (correctness check)."""
    bsz, n_views, _ = features.shape
    if labels is None and mask is None:
        mask = jnp.eye(bsz, dtype=jnp.float32)
    elif labels is not None:
        labels = jnp.asarray(labels).reshape(-1, 1)
        mask = (labels == labels.T).astype(jnp.float32)
    else:
        mask = jnp.asarray(mask).astype(jnp.float32)
    contrast_count = n_views
    contrast = jnp.concatenate([features[:, v, :] for v in range(n_views)], 0)
    if contrast_mode == 'one':
        anchor = features[:, 0, :]
        anchor_count = 1
    else:
        anchor = contrast
        anchor_count = contrast_count
    s = jnp.matmul(anchor, contrast.T,
                   precision=jax.lax.Precision.HIGHEST) / temperature
    logits = s - jnp.max(s, axis=1, keepdims=True)
    n_a = anchor_count * bsz
    n_c = contrast_count * bsz
    big_mask = jnp.tile(mask, (anchor_count, contrast_count))
    lmask = (jnp.arange(n_a)[:, None] != jnp.arange(n_c)[None, :]).astype(jnp.float32)
    m = big_mask * lmask
    exp_logits = jnp.exp(logits) * lmask
    log_prob = logits - jnp.log(exp_logits.sum(1, keepdims=True))
    pos = m.sum(1)
    pos = jnp.where(pos < 1e-6, 1.0, jnp.floor(pos))
    mlpp = (m * log_prob).sum(1) / pos
    return jnp.mean(-(temperature / base_temperature) * mlpp)


if __name__ == "__main__":
    key = jax.random.PRNGKey(0)
    k_feat, k_lab = jax.random.split(key)

    bsz, n_views, dim = 8, 2, 32
    features = jax.random.normal(k_feat, (bsz, n_views, dim), dtype=jnp.float32)
    features = features / jnp.linalg.norm(features, axis=-1, keepdims=True)
    labels = jax.random.randint(k_lab, (bsz,), 0, 3)

    # supervised 'all', SimCLR default (labels=None), and 'one' anchor mode
    checks = [
        dict(labels=labels),
        dict(labels=None),
        dict(labels=labels, contrast_mode='one'),
    ]
    for kw in checks:
        got = jax.block_until_ready(supcon_loss(features, **kw))
        ref = _reference_supcon(features, **kw)
        assert jnp.allclose(got, ref, rtol=1e-4, atol=1e-4), (kw, got, ref)

    print("KERNEL_OK")
</pallas_src>

<mosaic_0001>
module attributes {stable_mosaic.version = 11 : i64} {
  func.func @_supcon_kernel(%arg0: i32, %arg1: i32, %arg2: memref<16x1xi32, #tpu.memory_space<vmem>>, %arg3: memref<1x128xi32, #tpu.memory_space<vmem>>, %arg4: memref<16x128xf32, #tpu.memory_space<vmem>>, %arg5: memref<128x128xf32, #tpu.memory_space<vmem>>, %arg6: memref<16x1xf32, #tpu.memory_space<vmem>>, %arg7: memref<16x1xf32, #tpu.memory_space<vmem>>, %arg8: memref<16x1xf32, #tpu.memory_space<vmem>>, %arg9: memref<16x1xf32, #tpu.memory_space<vmem>>, %arg10: memref<16x1xf32, #tpu.memory_space<vmem>>) attributes {dimension_semantics = [#tpu.dimension_semantics<parallel>, #tpu.dimension_semantics<arbitrary>], iteration_bounds = array<i64: 1, 1>, scalar_prefetch = 0 : i64, scratch_operands = 4 : i64, tpu.core_type = #tpu.core_type<tc>, window_params = [{transform_indices = @transform_0, window_bounds = array<i64: 16, 1>}, {transform_indices = @transform_1, window_bounds = array<i64: 1, 128>}, {transform_indices = @transform_2, window_bounds = array<i64: 16, 128>}, {transform_indices = @transform_3, window_bounds = array<i64: 128, 128>}, {transform_indices = @transform_4, window_bounds = array<i64: 16, 1>}]} {
    %c0_i32 = arith.constant 0 : i32
    %0 = arith.cmpi eq, %arg1, %c0_i32 : i32
    %1 = arith.extui %0 : i1 to i32
    %c0_i32_0 = arith.constant 0 : i32
    %2 = arith.cmpi ne, %1, %c0_i32_0 : i32
    scf.if %2 {
      %cst_37 = arith.constant 0xFF800000 : f32
      %64 = vector.broadcast %cst_37 : f32 to vector<16x1xf32>
      %c0_38 = arith.constant 0 : index
      %c0_39 = arith.constant 0 : index
      %65 = vector.load %arg7[%c0_38, %c0_39] : memref<16x1xf32, #tpu.memory_space<vmem>>, vector<16x1xf32>
      tpu.vector_store %arg7[%c0_38, %c0_39], %64 {strides = array<i32>} : memref<16x1xf32, #tpu.memory_space<vmem>>, vector<16x1xf32>,
      %cst_40 = arith.constant 0.000000e+00 : f32
      %66 = vector.broadcast %cst_40 : f32 to vector<16x1xf32>
      %c0_41 = arith.constant 0 : index
      %c0_42 = arith.constant 0 : index
      %67 = vector.load %arg8[%c0_41, %c0_42] : memref<16x1xf32, #tpu.memory_space<vmem>>, vector<16x1xf32>
      tpu.vector_store %arg8[%c0_41, %c0_42], %66 {strides = array<i32>} : memref<16x1xf32, #tpu.memory_space<vmem>>, vector<16x1xf32>,
      %cst_43 = arith.constant 0.000000e+00 : f32
      %68 = vector.broadcast %cst_43 : f32 to vector<16x1xf32>
      %c0_44 = arith.constant 0 : index
      %c0_45 = arith.constant 0 : index
      %69 = vector.load %arg9[%c0_44, %c0_45] : memref<16x1xf32, #tpu.memory_space<vmem>>, vector<16x1xf32>
      tpu.vector_store %arg9[%c0_44, %c0_45], %68 {strides = array<i32>} : memref<16x1xf32, #tpu.memory_space<vmem>>, vector<16x1xf32>,
      %cst_46 = arith.constant 0.000000e+00 : f32
      %70 = vector.broadcast %cst_46 : f32 to vector<16x1xf32>
      %c0_47 = arith.constant 0 : index
      %c0_48 = arith.constant 0 : index
      %71 = vector.load %arg10[%c0_47, %c0_48] : memref<16x1xf32, #tpu.memory_space<vmem>>, vector<16x1xf32>
      tpu.vector_store %arg10[%c0_47, %c0_48], %70 {strides = array<i32>} : memref<16x1xf32, #tpu.memory_space<vmem>>, vector<16x1xf32>,
    } else {
    }
    %c0 = arith.constant 0 : index
    %c0_1 = arith.constant 0 : index
    %3 = vector.load %arg4[%c0, %c0_1] : memref<16x128xf32, #tpu.memory_space<vmem>>, vector<16x128xf32>
    %cst = arith.constant 14.2857141 : f32
    %4 = vector.broadcast %cst : f32 to vector<16x128xf32>
    %5 = arith.mulf %3, %4 : vector<16x128xf32>
    %c0_2 = arith.constant 0 : index
    %c0_3 = arith.constant 0 : index
    %6 = vector.load %arg5[%c0_2, %c0_3] : memref<128x128xf32, #tpu.memory_space<vmem>>, vector<128x128xf32>
    %cst_4 = arith.constant dense<0.000000e+00> : vector<16x128xf32>
    %7 = tpu.matmul %5, %6, %cst_4 {dimension_numbers = #tpu.dot_dimension_numbers<[1], [1], [0], [0], [0, 0, 1, 0], [], []>} : vector<16x128xf32>, vector<128x128xf32>, vector<16x128xf32> -> vector<16x128xf32>
    %8 = tpu.iota {dimensions = array<i32: 0>} : vector<16x128xi32>
    %c16_i32 = arith.constant 16 : i32
    %9 = arith.muli %arg0, %c16_i32 : i32
    %10 = vector.broadcast %9 : i32 to vector<16x128xi32>
    %11 = arith.addi %8, %10 : vector<16x128xi32>
    %12 = tpu.iota {dimensions = array<i32: 1>} : vector<16x128xi32>
    %c128_i32 = arith.constant 128 : i32
    %13 = arith.muli %arg1, %c128_i32 : i32
    %14 = vector.broadcast %13 : i32 to vector<16x128xi32>
    %15 = arith.addi %12, %14 : vector<16x128xi32>
    %c16_i32_5 = arith.constant 16 : i32
    %16 = vector.broadcast %c16_i32_5 : i32 to vector<16x128xi32>
    %17 = arith.cmpi slt, %15, %16 : vector<16x128xi32>
    %18 = arith.cmpi ne, %11, %15 : vector<16x128xi32>
    %19 = arith.andi %18, %17 : vector<16x128xi1>
    %c0_6 = arith.constant 0 : index
    %c0_7 = arith.constant 0 : index
    %20 = vector.load %arg2[%c0_6, %c0_7] : memref<16x1xi32, #tpu.memory_space<vmem>>, vector<16x1xi32>
    %c0_8 = arith.constant 0 : index
    %c0_9 = arith.constant 0 : index
    %21 = vector.load %arg3[%c0_8, %c0_9] : memref<1x128xi32, #tpu.memory_space<vmem>>, vector<1x128xi32>
    %22 = vector.broadcast %20 : vector<16x1xi32> to vector<16x128xi32>
    %23 = vector.broadcast %21 : vector<1x128xi32> to vector<16x128xi32>
    %24 = arith.cmpi eq, %22, %23 : vector<16x128xi32>
    %25 = arith.andi %24, %19 : vector<16x128xi1>
    %cst_10 = arith.constant 0xFF800000 : f32
    %26 = vector.broadcast %cst_10 : f32 to vector<16x128xf32>
    %27 = arith.select %17, %7, %26 : vector<16x128xi1>, vector<16x128xf32>
    %c0_11 = arith.constant 0 : index
    %c0_12 = arith.constant 0 : index
    %28 = vector.load %arg7[%c0_11, %c0_12] : memref<16x1xf32, #tpu.memory_space<vmem>>, vector<16x1xf32>
    %cst_13 = arith.constant dense<0xFF800000> : vector<16xf32>
    %29 = vector.multi_reduction <maximumf>, %27, %cst_13 [1] : vector<16x128xf32> to vector<16xf32>
    %30 = vector.shape_cast %29 : vector<16xf32> to vector<16x1xf32>
    %31 = arith.maximumf %28, %30 : vector<16x1xf32>
    %c0_14 = arith.constant 0 : index
    %c0_15 = arith.constant 0 : index
    %32 = vector.load %arg7[%c0_14, %c0_15] : memref<16x1xf32, #tpu.memory_space<vmem>>, vector<16x1xf32>
    %33 = arith.subf %32, %31 : vector<16x1xf32>
    %34 = math.exp %33 : vector<16x1xf32>
    %c0_16 = arith.constant 0 : index
    %c0_17 = arith.constant 0 : index
    %35 = vector.load %arg8[%c0_16, %c0_17] : memref<16x1xf32, #tpu.memory_space<vmem>>, vector<16x1xf32>
    %36 = arith.mulf %35, %34 : vector<16x1xf32>
    %37 = vector.broadcast %31 : vector<16x1xf32> to vector<16x128xf32>
    %38 = arith.subf %7, %37 : vector<16x128xf32>
    %39 = math.exp %38 : vector<16x128xf32>
    %cst_18 = arith.constant 0.000000e+00 : f32
    %40 = vector.broadcast %cst_18 : f32 to vector<16x128xf32>
    %41 = arith.select %19, %39, %40 : vector<16x128xi1>, vector<16x128xf32>
    %cst_19 = arith.constant dense<0.000000e+00> : vector<16xf32>
    %42 = vector.multi_reduction <add>, %41, %cst_19 [1] : vector<16x128xf32> to vector<16xf32>
    %43 = vector.shape_cast %42 : vector<16xf32> to vector<16x1xf32>
    %44 = arith.addf %36, %43 : vector<16x1xf32>
    %c0_20 = arith.constant 0 : index
    %c0_21 = arith.constant 0 : index
    %45 = vector.load %arg8[%c0_20, %c0_21] : memref<16x1xf32, #tpu.memory_space<vmem>>, vector<16x1xf32>
    tpu.vector_store %arg8[%c0_20, %c0_21], %44 {strides = array<i32>} : memref<16x1xf32, #tpu.memory_space<vmem>>, vector<16x1xf32>,
    %c0_22 = arith.constant 0 : index
    %c0_23 = arith.constant 0 : index
    %46 = vector.load %arg7[%c0_22, %c0_23] : memref<16x1xf32, #tpu.memory_space<vmem>>, vector<16x1xf32>
    tpu.vector_store %arg7[%c0_22, %c0_23], %31 {strides = array<i32>} : memref<16x1xf32, #tpu.memory_space<vmem>>, vector<16x1xf32>,
    %c0_24 = arith.constant 0 : index
    %c0_25 = arith.constant 0 : index
    %47 = vector.load %arg9[%c0_24, %c0_25] : memref<16x1xf32, #tpu.memory_space<vmem>>, vector<16x1xf32>
    %cst_26 = arith.constant 0.000000e+00 : f32
    %48 = vector.broadcast %cst_26 : f32 to vector<16x128xf32>
    %49 = arith.select %25, %7, %48 : vector<16x128xi1>, vector<16x128xf32>
    %cst_27 = arith.constant dense<0.000000e+00> : vector<16xf32>
    %50 = vector.multi_reduction <add>, %49, %cst_27 [1] : vector<16x128xf32> to vector<16xf32>
    %51 = vector.shape_cast %50 : vector<16xf32> to vector<16x1xf32>
    %52 = arith.addf %47, %51 : vector<16x1xf32>
    %c0_28 = arith.constant 0 : index
    %c0_29 = arith.constant 0 : index
    %53 = vector.load %arg9[%c0_28, %c0_29] : memref<16x1xf32, #tpu.memory_space<vmem>>, vector<16x1xf32>
    tpu.vector_store %arg9[%c0_28, %c0_29], %52 {strides = array<i32>} : memref<16x1xf32, #tpu.memory_space<vmem>>, vector<16x1xf32>,
    %c0_30 = arith.constant 0 : index
    %c0_31 = arith.constant 0 : index
    %54 = vector.load %arg10[%c0_30, %c0_31] : memref<16x1xf32, #tpu.memory_space<vmem>>, vector<16x1xf32>
    %55 = arith.extui %25 : vector<16x128xi1> to vector<16x128xi32>
    %56 = arith.sitofp %55 : vector<16x128xi32> to vector<16x128xf32>
    %cst_32 = arith.constant dense<0.000000e+00> : vector<16xf32>
    %57 = vector.multi_reduction <add>, %56, %cst_32 [1] : vector<16x128xf32> to vector<16xf32>
    %58 = vector.shape_cast %57 : vector<16xf32> to vector<16x1xf32>
    %59 = arith.addf %54, %58 : vector<16x1xf32>
    %c0_33 = arith.constant 0 : index
    %c0_34 = arith.constant 0 : index
    %60 = vector.load %arg10[%c0_33, %c0_34] : memref<16x1xf32, #tpu.memory_space<vmem>>, vector<16x1xf32>
    tpu.vector_store %arg10[%c0_33, %c0_34], %59 {strides = array<i32>} : memref<16x1xf32, #tpu.memory_space<vmem>>, vector<16x1xf32>,
    %c0_i32_35 = arith.constant 0 : i32
    %61 = arith.cmpi eq, %arg1, %c0_i32_35 : i32
    %62 = arith.extui %61 : i1 to i32
    %c0_i32_36 = arith.constant 0 : i32
    %63 = arith.cmpi ne, %62, %c0_i32_36 : i32
    scf.if %63 {
      %c0_37 = arith.constant 0 : index
      %c0_38 = arith.constant 0 : index
      %64 = vector.load %arg10[%c0_37, %c0_38] : memref<16x1xf32, #tpu.memory_space<vmem>>, vector<16x1xf32>
      %cst_39 = arith.constant 9.99999997E-7 : f32
      %65 = vector.broadcast %cst_39 : f32 to vector<16x1xf32>
      %66 = arith.cmpf olt, %64, %65 : vector<16x1xf32>
      %67 = math.floor %64 : vector<16x1xf32>
      %cst_40 = arith.constant 1.000000e+00 : f32
      %68 = vector.broadcast %cst_40 : f32 to vector<16x1xf32>
      %69 = arith.select %66, %68, %67 : vector<16x1xi1>, vector<16x1xf32>
      %c0_41 = arith.constant 0 : index
      %c0_42 = arith.constant 0 : index
      %70 = vector.load %arg7[%c0_41, %c0_42] : memref<16x1xf32, #tpu.memory_space<vmem>>, vector<16x1xf32>
      %c0_43 = arith.constant 0 : index
      %c0_44 = arith.constant 0 : index
      %71 = vector.load %arg8[%c0_43, %c0_44] : memref<16x1xf32, #tpu.memory_space<vmem>>, vector<16x1xf32>
      %72 = math.log %71 : vector<16x1xf32>
      %73 = arith.addf %70, %72 : vector<16x1xf32>
      %c0_45 = arith.constant 0 : index
      %c0_46 = arith.constant 0 : index
      %74 = vector.load %arg9[%c0_45, %c0_46] : memref<16x1xf32, #tpu.memory_space<vmem>>, vector<16x1xf32>
      %75 = arith.mulf %69, %73 : vector<16x1xf32>
      %76 = arith.subf %74, %75 : vector<16x1xf32>
      %77 = arith.divf %76, %69 : vector<16x1xf32>
      %cst_47 = arith.constant -1.000000e+00 : f32
      %78 = vector.broadcast %cst_47 : f32 to vector<16x1xf32>
      %79 = arith.mulf %78, %77 : vector<16x1xf32>
      %c0_48 = arith.constant 0 : index
      %c0_49 = arith.constant 0 : index
      %80 = vector.load %arg6[%c0_48, %c0_49] : memref<16x1xf32, #tpu.memory_space<vmem>>, vector<16x1xf32>
      tpu.vector_store %arg6[%c0_48, %c0_49], %79 {strides = array<i32>} : memref<16x1xf32, #tpu.memory_space<vmem>>, vector<16x1xf32>,
    } else {
    }
    return
  }
  func.func @transform_0(%arg0: i32, %arg1: i32) -> (i32, i32) {
    %c0_i32 = arith.constant 0 : i32
    %c0_i32_0 = arith.constant 0 : i32
    return %arg0, %c0_i32 : i32, i32
  }
  func.func @transform_1(%arg0: i32, %arg1: i32) -> (i32, i32) {
    %c0_i32 = arith.constant 0 : i32
    %c0_i32_0 = arith.constant 0 : i32
    return %c0_i32, %arg1 : i32, i32
  }
  func.func @transform_2(%arg0: i32, %arg1: i32) -> (i32, i32) {
    %c0_i32 = arith.constant 0 : i32
    %c0_i32_0 = arith.constant 0 : i32
    return %arg0, %c0_i32 : i32, i32
  }
  func.func @transform_3(%arg0: i32, %arg1: i32) -> (i32, i32) {
    %c0_i32 = arith.constant 0 : i32
    %c0_i32_0 = arith.constant 0 : i32
    return %arg1, %c0_i32 : i32, i32
  }
  func.func @transform_4(%arg0: i32, %arg1: i32) -> (i32, i32) {
    %c0_i32 = arith.constant 0 : i32
    %c0_i32_0 = arith.constant 0 : i32
    return %arg0, %c0_i32 : i32, i32
  }
}

</mosaic_0001>

<llo_original>
// kernel: tpu_custom_call.1
$region0: #{tpu_custom_call.1}
  #allocation0 [shape = 'u32[]', space=smem, size = 0x4, offset = 0x4, fixed_abs, tag = 'smem constant byte address 0x4 - core index']
  #allocation1 [shape = 'u32[72,128]{1,0:T(1,128)}', space=vmem, size = 0x9000, scoped, tag = 'internal scratch']
  #allocation2 [shape = 'f32[16,1]{1,0:T(8,128)}', space=vmem, size = 0x2000, scoped, tag = 'scratch operand']
  #allocation3 [shape = 'f32[16,1]{1,0:T(8,128)}', space=vmem, size = 0x2000, scoped, tag = 'scratch operand']
  #allocation4 [shape = 'f32[16,1]{1,0:T(8,128)}', space=vmem, size = 0x2000, scoped, tag = 'scratch operand']
  #allocation5 [shape = 'f32[16,1]{1,0:T(8,128)}', space=vmem, size = 0x2000, scoped, tag = 'scratch operand']
  %s0 = inlined_call_operand.vmem [shape: s32[16,1], index: 0, kind: input, shape index: {}]
  %s1 = inlined_call_operand.vmem [shape: s32[1,128], index: 1, kind: input, shape index: {}]
  %s2 = inlined_call_operand.vmem [shape: f32[16,128], index: 2, kind: input, shape index: {}]
  %s3 = inlined_call_operand.hbm [shape: f32[128,128], index: 3, kind: input, shape index: {}]
  %s4 = inlined_call_operand.vmem [shape: f32[16,1], index: 4, kind: output, shape index: {}]
  %s5 = sld [smem:[#allocation0]]
  $region38: #{tpu_custom_call.1} parent=0
    _
  %s7 = ssub.s32 1, %s5
  %s8 = scalar_select 0, %s7, %s5
  $region1: #{tpu_custom_call.1} parent=0
    #allocation6 [shape = 'u8[65536]{0}', space=vmem, size = 0x10000, scoped, tag = 'input window, operand 3, single buffered']
    #allocation7 [shape = 's32[1]{0}', space=sflag, size = 0x4, scoped, tag = 'scoped memory for tpu_custom_call.1']
    %9 = vsyncpa [#allocation7], 0
    // Predicated region
    $region2: #{tpu_custom_call.1} parent=1 // pred_check
      _
    $region3: #{tpu_custom_call.1} parent=1 // pred_check_branch
      %11 = sbr.rel (0) target = $region5
    $region4: #{tpu_custom_call.1} parent=1 // pred_region
      _
    $region5: #{tpu_custom_call.1} parent=1 // pred_fallthru
      _
    // Predicated region
    $region6: #{tpu_custom_call.1} parent=1 // pred_check
      _
    $region7: #{tpu_custom_call.1} parent=1 // pred_check_branch
      %13 = sbr.rel (0) target = $region9
    $region8: #{tpu_custom_call.1} parent=1 // pred_region
      _
    $region9: #{tpu_custom_call.1} parent=1 // pred_fallthru
      _
    // Predicated region
    $region10: #{tpu_custom_call.1} parent=1 // pred_check
      _
    $region11: #{tpu_custom_call.1} parent=1 // pred_check_branch
      %15 = sbr.rel (0) target = $region13
    $region12: #{tpu_custom_call.1} parent=1 // pred_region
      _
    $region13: #{tpu_custom_call.1} parent=1 // pred_fallthru
      _
    // Predicated region
    $region14: #{tpu_custom_call.1} parent=1 // pred_check
      _
    $region15: #{tpu_custom_call.1} parent=1 // pred_check_branch
      %17 = sbr.rel (0) target = $region17
    $region16: #{tpu_custom_call.1} parent=1 // pred_region
      %19 = vsyncadd [#allocation7], 0
      %s20 = sshll.u32 %s3, 4
      %s21 = int_to_ptr.hbm [resolvable:$true] %s20
      %s22 = sshll.u32 [#allocation6], 4
      %s23 = int_to_ptr.vmem [resolvable:$true] %s22
      %28 = dma.hbm_to_vmem [thread:$0]  %s21, 2048, %s23, [#allocation7], 128, 128, 8
    $region17: #{tpu_custom_call.1} parent=1 // pred_fallthru
      _
    // Predicated region
    $region18: #{tpu_custom_call.1} parent=1 // pred_check
      _
    $region19: #{tpu_custom_call.1} parent=1 // pred_check_branch
      %30 = sbr.rel (0) target = $region21
    $region20: #{tpu_custom_call.1} parent=1 // pred_region
      %32 = dma.done [#allocation7], 2048
    $region21: #{tpu_custom_call.1} parent=1 // pred_fallthru
      _
    %p33 = scmp.eq.s32.totalorder 0, 0
    // Predicated region
    $region22: #{tpu_custom_call.1} parent=1 // pred_check
      %p34 = pneg %p33
    $region23: #{tpu_custom_call.1} parent=1 // pred_check_branch
      %36 = sbr.rel (%p34) target = $region25
    $region24: #{tpu_custom_call.1} parent=1 // pred_region
      %vm37 = vcmask 7168
      %38 = vst.msk [vmem:[#allocation2] sm:$0xff] %vm37, -inf
      %39 = vst.msk [vmem:[#allocation2 + $0x8] sm:$0xff] %vm37, -inf
      %40 = vst.msk [vmem:[#allocation3] sm:$0xff] %vm37, 0.0
      %41 = vst.msk [vmem:[#allocation3 + $0x8] sm:$0xff] %vm37, 0.0
      %42 = vst.msk [vmem:[#allocation4] sm:$0xff] %vm37, 0.0
      %43 = vst.msk [vmem:[#allocation4 + $0x8] sm:$0xff] %vm37, 0.0
      %44 = vst.msk [vmem:[#allocation5] sm:$0xff] %vm37, 0.0
      %45 = vst.msk [vmem:[#allocation5 + $0x8] sm:$0xff] %vm37, 0.0
    $region25: #{tpu_custom_call.1} parent=1 // pred_fallthru
      _
    %v46 = vld [vmem:[%s2] sm:$0xff]
    %v47 = vld [vmem:[%s2 + $0x8] sm:$0xff]
    %v48 = vmul.f32 %v46, 14.285714
    %v49 = vmul.f32 %v47, 14.285714
    %v50 = vld [vmem:[#allocation6] sm:$0xff]
    %v51 = vld [vmem:[#allocation6 + $0x8] sm:$0xff]
    %v52 = vld [vmem:[#allocation6 + $0x10] sm:$0xff]
    %v53 = vld [vmem:[#allocation6 + $0x18] sm:$0xff]
    %v54 = vld [vmem:[#allocation6 + $0x20] sm:$0xff]
    %v55 = vld [vmem:[#allocation6 + $0x28] sm:$0xff]
    %v56 = vld [vmem:[#allocation6 + $0x30] sm:$0xff]
    %v57 = vld [vmem:[#allocation6 + $0x38] sm:$0xff]
    %v58 = vld [vmem:[#allocation6 + $0x40] sm:$0xff]
    %v59 = vld [vmem:[#allocation6 + $0x48] sm:$0xff]
    %v60 = vld [vmem:[#allocation6 + $0x50] sm:$0xff]
    %v61 = vld [vmem:[#allocation6 + $0x58] sm:$0xff]
    %v62 = vld [vmem:[#allocation6 + $0x60] sm:$0xff]
    %v63 = vld [vmem:[#allocation6 + $0x68] sm:$0xff]
    %v64 = vld [vmem:[#allocation6 + $0x70] sm:$0xff]
    %v65 = vld [vmem:[#allocation6 + $0x78] sm:$0xff]
    %66 = vmatpush.xpose.msra.mxu0 %v65
    %67 = vmatpush.xpose.msra.mxu0 %v64
    %68 = vmatpush.xpose.msra.mxu0 %v63
    %69 = vmatpush.xpose.msra.mxu0 %v62
    %70 = vmatpush.xpose.msra.mxu0 %v61
    %71 = vmatpush.xpose.msra.mxu0 %v60
    %72 = vmatpush.xpose.msra.mxu0 %v59
    %73 = vmatpush.xpose.msra.mxu0 %v58
    %74 = vmatpush.xpose.msra.mxu0 %v57
    %75 = vmatpush.xpose.msra.mxu0 %v56
    %76 = vmatpush.xpose.msra.mxu0 %v55
    %77 = vmatpush.xpose.msra.mxu0 %v54
    %78 = vmatpush.xpose.msra.mxu0 %v53
    %79 = vmatpush.xpose.msra.mxu0 %v52
    %80 = vmatpush.xpose.msra.mxu0 %v51
    %81 = vmatpush.xpose.msra.mxu0 %v50
    %82 = vmatmul.f32.gmra.mxu0 %v48
    %v83 = vpop.f32.mrf.mxu0
    %v84 = vadd.f32 0.0, %v83
    %85 = vmatmul.f32.gmra.mxu0 %v49
    %v86 = vpop.f32.mrf.mxu0
    %v87 = vadd.f32 0.0, %v86
    %88 = vdwg.mxu0
    %v89 = vlaneseq
    %v90 = vshrl.u32 %v89, 7
    %v91 = vadd.s32 %v90, 8
    %s92 = smul.u32 0, 16
    %v93 = vstv %s92
    %v94 = vadd.s32 %v90, %v93
    %v95 = vadd.s32 %v91, %v93
    %v96 = vlaneseq
    %v97 = vand.u32 %v96, 127
    %s98 = smul.u32 0, 128
    %v99 = vstv %s98
    %v100 = vadd.s32 %v97, %v99
    %vm101 = vcmp.lt.s32.totalorder %v100, 16
    %vm102 = vcmp.ne.s32.totalorder %v94, %v100
    %vm103 = vcmp.ne.s32.totalorder %v95, %v100
    %vm104 = vmand %vm102, %vm101
    %vm105 = vmand %vm103, %vm101
    %v106 = vld [vmem:[%s0] sm:$0xff]
    %v107 = vld [vmem:[%s0 + $0x8] sm:$0xff]
    %v108 = vld [vmem:[%s1] sm:$0x1]
    %109 = vset.pattern.permute.xlu0 0
    %110 = vperm.xlu0 %109, %v106
    %v111 = vpop.permute.xlu0 %110
    %112 = vset.pattern.permute.xlu0 0
    %113 = vperm.xlu0 %112, %v107
    %v114 = vpop.permute.xlu0 %113
    %v115 = vperm.slane %v108, 0
    %vm116 = vcmp.eq.s32.totalorder %v111, %v115
    %vm117 = vcmp.eq.s32.totalorder %v114, %v115
    %vm118 = vmand %vm116, %vm104
    %vm119 = vmand %vm117, %vm105
    %v120 = vsel %vm101, %v84, -inf
    %v121 = vsel %vm101, %v87, -inf
    %v122 = vld [vmem:[#allocation2] sm:$0xff]
    %v123 = vld [vmem:[#allocation2 + $0x8] sm:$0xff]
    %124 = vmax.xlane.f32.xlu0 %v120
    %v125 = vpop.xlane.xlu0 %124
    %126 = vmax.xlane.f32.xlu0 %v121
    %v127 = vpop.xlane.xlu0 %126
    %v128 = vmax.f32 %v122, %v125
    %v129 = vmax.f32 %v123, %v127
    %v130 = vsub.f32 %v122, %v128
    %v131 = vsub.f32 %v123, %v129
    %v132 = vmul.f32 %v130, 1.442695
    %v133 = vpow.pop %v132
    %v134 = vmul.f32 %v131, 1.442695
    %v135 = vpow.pop %v134
    %v136 = vld [vmem:[#allocation3] sm:$0xff]
    %v137 = vld [vmem:[#allocation3 + $0x8] sm:$0xff]
    %v138 = vmul.f32 %v136, %v133
    %v139 = vmul.f32 %v137, %v135
    %141 = vset.pattern.permute.xlu0 0
    %142 = vperm.xlu0 %141, %v128
    %v143 = vpop.permute.xlu0 %142
    %146 = vset.pattern.permute.xlu0 0
    %147 = vperm.xlu0 %146, %v129
    %v148 = vpop.permute.xlu0 %147
    %v150 = vsub.f32 %v84, %v143
    %v151 = vsub.f32 %v87, %v148
    %v152 = vmul.f32 %v150, 1.442695
    %v153 = vpow.pop %v152
    %v154 = vmul.f32 %v151, 1.442695
    %v155 = vpow.pop %v154
    %v156 = vsel %vm104, %v153, 0.0
    %v157 = vsel %vm105, %v155, 0.0
    %158 = vadd.xlane.f32.xlu0 %v156
    %v159 = vpop.xlane.xlu0 %158
    %160 = vadd.xlane.f32.xlu0 %v157
    %v161 = vpop.xlane.xlu0 %160
    %v162 = vadd.f32 %v138, %v159
    %v163 = vadd.f32 %v139, %v161
    %vm164 = vcmask 7168
    %165 = vst.msk [vmem:[#allocation3] sm:$0xff] %vm164, %v162
    %166 = vst.msk [vmem:[#allocation3 + $0x8] sm:$0xff] %vm164, %v163
    %167 = vst.msk [vmem:[#allocation2] sm:$0xff] %vm164, %v128
    %168 = vst.msk [vmem:[#allocation2 + $0x8] sm:$0xff] %vm164, %v129
    %v169 = vld [vmem:[#allocation4] sm:$0xff]
    %v170 = vld [vmem:[#allocation4 + $0x8] sm:$0xff]
    %v171 = vsel %vm118, %v84, 0.0
    %v172 = vsel %vm119, %v87, 0.0
    %173 = vadd.xlane.f32.xlu0 %v171
    %v174 = vpop.xlane.xlu0 %173
    %175 = vadd.xlane.f32.xlu0 %v172
    %v176 = vpop.xlane.xlu0 %175
    %v177 = vadd.f32 %v169, %v174
    %v178 = vadd.f32 %v170, %v176
    %179 = vst.msk [vmem:[#allocation4] sm:$0xff] %vm164, %v177
    %180 = vst.msk [vmem:[#allocation4 + $0x8] sm:$0xff] %vm164, %v178
    %v181 = vld [vmem:[#allocation5] sm:$0xff]
    %v182 = vld [vmem:[#allocation5 + $0x8] sm:$0xff]
    %v183 = vsel %vm118, 1, 0
    %v184 = vsel %vm119, 1, 0
    %v185 = vcvt.s32.f32 %v183
    %v186 = vcvt.s32.f32 %v184
    %187 = vadd.xlane.f32.xlu0 %v185
    %v188 = vpop.xlane.xlu0 %187
    %189 = vadd.xlane.f32.xlu0 %v186
    %v190 = vpop.xlane.xlu0 %189
    %v191 = vadd.f32 %v181, %v188
    %v192 = vadd.f32 %v182, %v190
    %193 = vst.msk [vmem:[#allocation5] sm:$0xff] %vm164, %v191
    %194 = vst.msk [vmem:[#allocation5 + $0x8] sm:$0xff] %vm164, %v192
    // Predicated region
    $region26: #{tpu_custom_call.1} parent=1 // pred_check
      %p195 = pneg %p33
    $region27: #{tpu_custom_call.1} parent=1 // pred_check_branch
      %197 = sbr.rel (%p195) target = $region29
    $region28: #{tpu_custom_call.1} parent=1 // pred_region
      %v198 = vld [vmem:[#allocation5] sm:$0xff]
      %v199 = vld [vmem:[#allocation5 + $0x8] sm:$0xff]
      %vm200 = vcmp.lt.f32.partialorder %v198, 1e-06
      %vm201 = vcmp.lt.f32.partialorder %v199, 1e-06
      %v202 = vfloor.f32 %v198
      %v203 = vfloor.f32 %v199
      %v204 = vsel %vm200, 1.0, %v202
      %v205 = vsel %vm201, 1.0, %v203
      %v206 = vld [vmem:[#allocation2] sm:$0xff]
      %v207 = vld [vmem:[#allocation2 + $0x8] sm:$0xff]
      %v208 = vld [vmem:[#allocation3] sm:$0xff]
      %v209 = vld [vmem:[#allocation3 + $0x8] sm:$0xff]
      %v210 = vlog2.pop %v208
      %v211 = vmul.f32 %v210, 0.6931472
      %v212 = vlog2.pop %v209
      %v213 = vmul.f32 %v212, 0.6931472
      %v214 = vadd.f32 %v206, %v211
      %v215 = vadd.f32 %v207, %v213
      %v216 = vld [vmem:[#allocation4] sm:$0xff]
      %v217 = vld [vmem:[#allocation4 + $0x8] sm:$0xff]
      %v218 = vmul.f32 %v204, %v214
      %v219 = vmul.f32 %v205, %v215
      %v220 = vsub.f32 %v216, %v218
      %v221 = vsub.f32 %v217, %v219
      %v222 = vrcp.pop %v204
      %v223 = vmul.f32 %v204, %v222
      %v224 = vsub.f32 1.0, %v223
      %v225 = vmul.f32 %v222, %v224
      %v226 = vadd.f32 %v222, %v225
      %vm227 = vweird.f32 %v204
      %vm228 = vweird.f32 %v222
      %vm229 = vmor %vm227, %vm228
      %v230 = vsel %vm229, %v222, %v226
      %v231 = vand.u32 2147483647, %v204
      %vm232 = vcmp.eq.f32.partialorder %v231, 8.507059e+37
      %v233 = vand.u32 %v204, 2147483648
      %v234 = vor.u32 1.1754944e-38, %v233
      %v235 = vsel %vm232, %v234, %v230
      %v236 = vmul.f32 %v220, %v235
      %v237 = vrcp.pop %v205
      %v238 = vmul.f32 %v205, %v237
      %v239 = vsub.f32 1.0, %v238
      %v240 = vmul.f32 %v237, %v239
      %v241 = vadd.f32 %v237, %v240
      %vm242 = vweird.f32 %v205
      %vm243 = vweird.f32 %v237
      %vm244 = vmor %vm242, %vm243
      %v245 = vsel %vm244, %v237, %v241
      %v246 = vand.u32 2147483647, %v205
      %vm247 = vcmp.eq.f32.partialorder %v246, 8.507059e+37
      %v248 = vand.u32 %v205, 2147483648
      %v249 = vor.u32 1.1754944e-38, %v248
      %v250 = vsel %vm247, %v249, %v245
      %v251 = vmul.f32 %v221, %v250
      %v252 = vmul.f32 %v236, -1.0
      %v253 = vmul.f32 %v251, -1.0
      %254 = vst.msk [vmem:[%s4] sm:$0xff] %vm164, %v252
      %255 = vst.msk [vmem:[%s4 + $0x8] sm:$0xff] %vm164, %v253
    $region29: #{tpu_custom_call.1} parent=1 // pred_fallthru
      _
    // Predicated region
    $region30: #{tpu_custom_call.1} parent=1 // pred_check
      _
    $region31: #{tpu_custom_call.1} parent=1 // pred_check_branch
      %257 = sbr.rel (0) target = $region33
    $region32: #{tpu_custom_call.1} parent=1 // pred_region
      _
    $region33: #{tpu_custom_call.1} parent=1 // pred_fallthru
      _
    // Predicated region
    $region34: #{tpu_custom_call.1} parent=1 // pred_check
      _
    $region35: #{tpu_custom_call.1} parent=1 // pred_check_branch
      %259 = sbr.rel (0) target = $region37
    $region36: #{tpu_custom_call.1} parent=1 // pred_region
      _
    $region37: #{tpu_custom_call.1} parent=1 // pred_fallthru
      _
    %260 = vsyncpa [#allocation7], 1

</llo_original>
